<compile_context>
chip_gen: v5e
topology: v5e:2x2
jax: 0.10.0
libtpu: 0.0.40
codegen_flags: <defaults>
</compile_context>

<pallas_src>
import functools

import jax
import jax.numpy as jnp
from jax.experimental import pallas as pl
from jax.experimental.pallas import tpu as pltpu


def _layernorm_kernel(x_ref, gamma_ref, beta_ref, o_ref, *, epsilon, dim):
    # x_ref: (tile_rows, D_pad); gamma_ref/beta_ref: (1, D_pad).
    # Rows are fully independent: padded tail rows (from the cdiv grid) compute on
    # garbage but their stores are masked by Pallas -> safe. Do not add any cross-row
    # reduction here without revisiting that.
    x = x_ref[...].astype(jnp.float32)

    # Single sweep over the tile: sum and sum-of-squares. Lane padding (if any) is
    # zero-valued, so it contributes nothing; divide by the true embed dim.
    s1 = jnp.sum(x, axis=-1, keepdims=True)
    s2 = jnp.sum(x * x, axis=-1, keepdims=True)
    n = jnp.float32(dim)
    mean = s1 / n
    # torch.std default is the unbiased estimator (divide by N-1), matching the module.
    # NOTE: dim == 1 divides by zero -> nan, same as torch.
    var = jnp.maximum((s2 - n * mean * mean) / (n - 1.0), 0.0)
    std = jnp.sqrt(var)

    # EUP approx reciprocal (own VLIW slot) + one Newton step on a tiny (tile, 1)
    # array -> ~f32 accuracy at negligible cost, then a VPU multiply instead of a divide.
    y = std + epsilon
    inv = pl.reciprocal(y, approx=True)
    inv = inv * (2.0 - y * inv)

    gamma = gamma_ref[...].astype(jnp.float32)
    beta = beta_ref[...].astype(jnp.float32)
    o_ref[...] = (gamma * ((x - mean) * inv) + beta).astype(o_ref.dtype)


def layer_normalization(x, gamma, beta, epsilon=1e-6):
    """LayerNormalization forward matching the PyTorch module.

    x: (..., dim_embed); gamma/beta: (dim_embed,)
    """
    orig_shape = x.shape
    d = orig_shape[-1]
    x2 = x.reshape(-1, d)
    rows = x2.shape[0]

    # --- Lane-dense embed dim: pad D to a multiple of 128 (zeros in x, gamma, beta) ---
    d_pad = ((d + 127) // 128) * 128
    if d_pad != d:
        pad = d_pad - d
        x2 = jnp.pad(x2, ((0, 0), (0, pad)))
        gamma_p = jnp.pad(gamma, (0, pad))
        beta_p = jnp.pad(beta, (0, pad))
    else:
        gamma_p, beta_p = gamma, beta
    gamma2 = gamma_p.reshape(1, d_pad)
    beta2 = beta_p.reshape(1, d_pad)

    # --- Generation-dependent VMEM budget (v5e/v6e: 128 MiB physical, v7x: 64 MiB) ---
    try:
        vmem_cap = pltpu.get_tpu_info().vmem_capacity_bytes
    except Exception:
        vmem_cap = 64 * 1024 * 1024  # conservative (v7x-sized) fallback
    if vmem_cap >= 128 * 1024 * 1024:          # v5e / v6e
        buffer_budget = 24 * 1024 * 1024
        vmem_limit = 64 * 1024 * 1024
    else:                                      # v7x
        buffer_budget = 12 * 1024 * 1024
        vmem_limit = 40 * 1024 * 1024

    # --- Tile sizing (memory-bound => big tiles, but keep the pipeline deep) ---
    itemsize = jnp.dtype(x2.dtype).itemsize
    # double-buffered input + output blocks (4 * itemsize) plus ~3 f32 temporaries
    # from the in-kernel f32 promotion / elementwise math.
    bytes_per_tile_row = (4 * itemsize + 3 * 4) * d_pad
    cap = buffer_budget // bytes_per_tile_row
    cap = max(8, (cap // 8) * 8)               # sublane (8) aligned
    cap = min(cap, 512)                        # ~85% of HBM roofline already at 512 rows

    # Pipeline-depth floor: when the problem is large enough, force >= 8 grid steps
    # (>= 4 per TensorCore when v7x shards the parallel row axis across its 2 TCs).
    min_steps = 8
    if rows >= min_steps * 8:
        cap = min(cap, max(8, ((rows // min_steps) // 8) * 8))

    # Whole problem if small, otherwise the capped tile; always 8-aligned.
    tile = min(cap, ((rows + 7) // 8) * 8)
    grid = (pl.cdiv(rows, tile),)

    kernel = functools.partial(_layernorm_kernel, epsilon=epsilon, dim=d)

    out = pl.pallas_call(
        kernel,
        out_shape=jax.ShapeDtypeStruct((rows, d_pad), x.dtype),
        grid_spec=pltpu.PrefetchScalarGridSpec(
            num_scalar_prefetch=0,
            grid=grid,
            in_specs=[
                pl.BlockSpec((tile, d_pad), lambda i: (i, 0)),
                # gamma/beta: (1, D_pad) blocks with a constant index_map -> fetched
                # once and broadcast against every row tile inside the kernel.
                pl.BlockSpec((1, d_pad), lambda i: (0, 0)),
                pl.BlockSpec((1, d_pad), lambda i: (0, 0)),
            ],
            out_specs=pl.BlockSpec((tile, d_pad), lambda i: (i, 0)),
        ),
        compiler_params=pltpu.CompilerParams(
            # Row axis is parallel: lets v7x shard the grid across its 2 TCs.
            dimension_semantics=("parallel",),
            vmem_limit_bytes=vmem_limit,
        ),
    )(x2, gamma2, beta2)

    if d_pad != d:
        out = out[:, :d]
    return out.reshape(orig_shape)


if __name__ == "__main__":
    batch, seq, dim_embed = 2, 8, 32

    key = jax.random.PRNGKey(0)
    x = jax.random.normal(key, (batch, seq, dim_embed), dtype=jnp.float32)

    # Deterministic parameter init matching nn.Parameter(torch.ones/zeros(dim)).
    gamma = jnp.ones((dim_embed,), dtype=jnp.float32)
    beta = jnp.zeros((dim_embed,), dtype=jnp.float32)

    out = layer_normalization(x, gamma, beta, epsilon=1e-6)
    out = jax.block_until_ready(out)

    # Pure-JAX reference (torch.std is unbiased => ddof=1, eps outside the sqrt).
    mean = jnp.mean(x, axis=-1, keepdims=True)
    std = jnp.std(x, axis=-1, keepdims=True, ddof=1)
    ref = gamma * ((x - mean) / (std + 1e-6)) + beta
    assert jnp.allclose(out, ref, atol=1e-4, rtol=1e-4), "mismatch vs reference"

    print("KERNEL_OK")
</pallas_src>

<mosaic_0001>
module attributes {stable_mosaic.version = 11 : i64} {
  func.func @_layernorm_kernel(%arg0: i32, %arg1: memref<16x128xf32, #tpu.memory_space<vmem>>, %arg2: memref<1x128xf32, #tpu.memory_space<vmem>>, %arg3: memref<1x128xf32, #tpu.memory_space<vmem>>, %arg4: memref<16x128xf32, #tpu.memory_space<vmem>>) attributes {dimension_semantics = [#tpu.dimension_semantics<parallel>], iteration_bounds = array<i64: 1>, scalar_prefetch = 0 : i64, scratch_operands = 0 : i64, tpu.core_type = #tpu.core_type<tc>, window_params = [{transform_indices = @transform_0, window_bounds = array<i64: 16, 128>}, {pipeline_mode = #tpu.pipeline_mode<synchronous>, transform_indices = @transform_1, window_bounds = array<i64: 1, 128>}, {pipeline_mode = #tpu.pipeline_mode<synchronous>, transform_indices = @transform_2, window_bounds = array<i64: 1, 128>}, {transform_indices = @transform_3, window_bounds = array<i64: 16, 128>}]} {
    %c0 = arith.constant 0 : index
    %c0_0 = arith.constant 0 : index
    %0 = vector.load %arg1[%c0, %c0_0] : memref<16x128xf32, #tpu.memory_space<vmem>>, vector<16x128xf32>
    %cst = arith.constant dense<0.000000e+00> : vector<16xf32>
    %1 = vector.multi_reduction <add>, %0, %cst [1] : vector<16x128xf32> to vector<16xf32>
    %2 = vector.shape_cast %1 : vector<16xf32> to vector<16x1xf32>
    %3 = arith.mulf %0, %0 : vector<16x128xf32>
    %cst_1 = arith.constant dense<0.000000e+00> : vector<16xf32>
    %4 = vector.multi_reduction <add>, %3, %cst_1 [1] : vector<16x128xf32> to vector<16xf32>
    %5 = vector.shape_cast %4 : vector<16xf32> to vector<16x1xf32>
    %cst_2 = arith.constant 3.200000e+01 : f32
    %6 = vector.broadcast %cst_2 : f32 to vector<16x1xf32>
    %7 = arith.divf %2, %6 : vector<16x1xf32>
    %cst_3 = arith.constant 3.200000e+01 : f32
    %8 = vector.broadcast %cst_3 : f32 to vector<16x1xf32>
    %9 = arith.mulf %8, %7 : vector<16x1xf32>
    %10 = arith.mulf %9, %7 : vector<16x1xf32>
    %11 = arith.subf %5, %10 : vector<16x1xf32>
    %cst_4 = arith.constant 3.200000e+01 : f32
    %cst_5 = arith.constant 1.000000e+00 : f32
    %12 = arith.subf %cst_4, %cst_5 : f32
    %13 = vector.broadcast %12 : f32 to vector<16x1xf32>
    %14 = arith.divf %11, %13 : vector<16x1xf32>
    %cst_6 = arith.constant 0.000000e+00 : f32
    %15 = vector.broadcast %cst_6 : f32 to vector<16x1xf32>
    %16 = arith.maximumf %14, %15 : vector<16x1xf32>
    %17 = math.sqrt %16 : vector<16x1xf32>
    %cst_7 = arith.constant 9.99999997E-7 : f32
    %18 = vector.broadcast %cst_7 : f32 to vector<16x1xf32>
    %19 = arith.addf %17, %18 : vector<16x1xf32>
    %20 = tpu.reciprocal %19 {approx = true} : vector<16x1xf32> -> vector<16x1xf32>
    %21 = arith.mulf %19, %20 : vector<16x1xf32>
    %cst_8 = arith.constant 2.000000e+00 : f32
    %22 = vector.broadcast %cst_8 : f32 to vector<16x1xf32>
    %23 = arith.subf %22, %21 : vector<16x1xf32>
    %24 = arith.mulf %20, %23 : vector<16x1xf32>
    %c0_9 = arith.constant 0 : index
    %c0_10 = arith.constant 0 : index
    %25 = vector.load %arg2[%c0_9, %c0_10] : memref<1x128xf32, #tpu.memory_space<vmem>>, vector<1x128xf32>
    %c0_11 = arith.constant 0 : index
    %c0_12 = arith.constant 0 : index
    %26 = vector.load %arg3[%c0_11, %c0_12] : memref<1x128xf32, #tpu.memory_space<vmem>>, vector<1x128xf32>
    %27 = vector.broadcast %7 : vector<16x1xf32> to vector<16x128xf32>
    %28 = arith.subf %0, %27 : vector<16x128xf32>
    %29 = vector.broadcast %24 : vector<16x1xf32> to vector<16x128xf32>
    %30 = arith.mulf %28, %29 : vector<16x128xf32>
    %31 = vector.broadcast %25 : vector<1x128xf32> to vector<16x128xf32>
    %32 = arith.mulf %31, %30 : vector<16x128xf32>
    %33 = vector.broadcast %26 : vector<1x128xf32> to vector<16x128xf32>
    %34 = arith.addf %32, %33 : vector<16x128xf32>
    %c0_13 = arith.constant 0 : index
    %c0_14 = arith.constant 0 : index
    %35 = vector.load %arg4[%c0_13, %c0_14] : memref<16x128xf32, #tpu.memory_space<vmem>>, vector<16x128xf32>
    tpu.vector_store %arg4[%c0_13, %c0_14], %34 {strides = array<i32>} : memref<16x128xf32, #tpu.memory_space<vmem>>, vector<16x128xf32>,
    return
  }
  func.func @transform_0(%arg0: i32) -> (i32, i32) {
    %c0_i32 = arith.constant 0 : i32
    %c0_i32_0 = arith.constant 0 : i32
    return %arg0, %c0_i32 : i32, i32
  }
  func.func @transform_1(%arg0: i32) -> (i32, i32) {
    %c0_i32 = arith.constant 0 : i32
    %c0_i32_0 = arith.constant 0 : i32
    %c0_i32_1 = arith.constant 0 : i32
    return %c0_i32, %c0_i32_0 : i32, i32
  }
  func.func @transform_2(%arg0: i32) -> (i32, i32) {
    %c0_i32 = arith.constant 0 : i32
    %c0_i32_0 = arith.constant 0 : i32
    %c0_i32_1 = arith.constant 0 : i32
    return %c0_i32, %c0_i32_0 : i32, i32
  }
  func.func @transform_3(%arg0: i32) -> (i32, i32) {
    %c0_i32 = arith.constant 0 : i32
    %c0_i32_0 = arith.constant 0 : i32
    return %arg0, %c0_i32 : i32, i32
  }
}

</mosaic_0001>

<llo_original>
// kernel: tpu_custom_call.1
$region0: #{tpu_custom_call.1}
  #allocation0 [shape = 'u32[]', space=smem, size = 0x4, offset = 0x4, fixed_abs, tag = 'smem constant byte address 0x4 - core index']
  #allocation1 [shape = 'u32[72,128]{1,0:T(1,128)}', space=vmem, size = 0x9000, scoped, tag = 'internal scratch']
  %s0 = inlined_call_operand.hbm [shape: f32[16,128], index: 0, kind: input, shape index: {}]
  %s1 = inlined_call_operand.hbm [shape: f32[1,128], index: 1, kind: input, shape index: {}]
  %s2 = inlined_call_operand.vmem [shape: f32[1,128], index: 2, kind: input, shape index: {}]
  %s3 = inlined_call_operand.hbm [shape: f32[16,128], index: 3, kind: output, shape index: {}]
  %s4 = sld [smem:[#allocation0]]
  $region30: #{tpu_custom_call.1} parent=0
    _
  %s6 = ssub.s32 1, %s4
  %s7 = scalar_select 0, %s6, %s4
  $region1: #{tpu_custom_call.1} parent=0
    #allocation2 [shape = 'u8[8192]{0}', space=vmem, size = 0x2000, scoped, tag = 'input window, operand 0, single buffered']
    #allocation3 [shape = 's32[1]{0}', space=sflag, size = 0x4, scoped, tag = 'scoped memory for tpu_custom_call.1']
    #allocation4 [shape = 's32[1]{0}', space=sflag, size = 0x4, scoped, tag = 'scoped memory for tpu_custom_call.1']
    #allocation5 [shape = 'u8[512]{0}', space=vmem, size = 0x400, scoped, tag = 'input window, operand 1, single buffered']
    #allocation6 [shape = 's32[1]{0}', space=sflag, size = 0x4, scoped, tag = 'scoped memory for tpu_custom_call.1']
    #allocation7 [shape = 'u8[8192]{0}', space=vmem, size = 0x2000, scoped, tag = 'output window, operand 0, single buffered']
    %8 = vsyncpa [#allocation3], 0
    %9 = vsyncpa [#allocation6], 0
    %10 = vsyncpa [#allocation4], 0
    // Predicated region
    $region2: #{tpu_custom_call.1} parent=1 // pred_check
      _
    $region3: #{tpu_custom_call.1} parent=1 // pred_check_branch
      %12 = sbr.rel (0) target = $region5
    $region4: #{tpu_custom_call.1} parent=1 // pred_region
      %14 = vsyncadd [#allocation3], 0
      %s15 = sshll.u32 %s0, 4
      %s16 = int_to_ptr.hbm [resolvable:$true] %s15
      %s17 = sshll.u32 [#allocation2], 4
      %s18 = int_to_ptr.vmem [resolvable:$true] %s17
      %23 = dma.hbm_to_vmem [thread:$0]  %s16, 256, %s18, [#allocation3], 128, 128, 8
    $region5: #{tpu_custom_call.1} parent=1 // pred_fallthru
      _
    // Predicated region
    $region6: #{tpu_custom_call.1} parent=1 // pred_check
      _
    $region7: #{tpu_custom_call.1} parent=1 // pred_check_branch
      %25 = sbr.rel (0) target = $region9
    $region8: #{tpu_custom_call.1} parent=1 // pred_region
      %27 = vsyncadd [#allocation6], 0
      %s29 = sshll.u32 %s1, 4
      %s30 = int_to_ptr.hbm [resolvable:$true] %s29
      %s31 = sshll.u32 [#allocation5], 4
      %s32 = int_to_ptr.vmem [resolvable:$true] %s31
      %34 = dma.hbm_to_vmem [thread:$0]  %s30, 16, %s32, [#allocation6]
    $region9: #{tpu_custom_call.1} parent=1 // pred_fallthru
      _
    // Predicated region
    $region10: #{tpu_custom_call.1} parent=1 // pred_check
      _
    $region11: #{tpu_custom_call.1} parent=1 // pred_check_branch
      %36 = sbr.rel (0) target = $region13
    $region12: #{tpu_custom_call.1} parent=1 // pred_region
      _
    $region13: #{tpu_custom_call.1} parent=1 // pred_fallthru
      _
    // Predicated region
    $region14: #{tpu_custom_call.1} parent=1 // pred_check
      _
    $region15: #{tpu_custom_call.1} parent=1 // pred_check_branch
      %38 = sbr.rel (0) target = $region17
    $region16: #{tpu_custom_call.1} parent=1 // pred_region
      %40 = dma.done [#allocation3], 256
    $region17: #{tpu_custom_call.1} parent=1 // pred_fallthru
      _
    // Predicated region
    $region18: #{tpu_custom_call.1} parent=1 // pred_check
      _
    $region19: #{tpu_custom_call.1} parent=1 // pred_check_branch
      %42 = sbr.rel (0) target = $region21
    $region20: #{tpu_custom_call.1} parent=1 // pred_region
      %44 = dma.done [#allocation6], 16
    $region21: #{tpu_custom_call.1} parent=1 // pred_fallthru
      _
    %v45 = vld [vmem:[#allocation2] sm:$0xff]
    %v46 = vld [vmem:[#allocation2 + $0x8] sm:$0xff]
    %47 = vadd.xlane.f32.xlu0 %v45
    %v48 = vpop.xlane.xlu0 %47
    %49 = vadd.xlane.f32.xlu0 %v46
    %v50 = vpop.xlane.xlu0 %49
    %v51 = vmul.f32 %v45, %v45
    %v52 = vmul.f32 %v46, %v46
    %53 = vadd.xlane.f32.xlu0 %v51
    %v54 = vpop.xlane.xlu0 %53
    %55 = vadd.xlane.f32.xlu0 %v52
    %v56 = vpop.xlane.xlu0 %55
    %v57 = vrcp.pop 32.0
    %v58 = vmul.f32 32.0, %v57
    %v59 = vsub.f32 1.0, %v58
    %v60 = vmul.f32 %v57, %v59
    %v61 = vadd.f32 %v57, %v60
    %vm62 = vweird.f32 %v57
    %v63 = vsel %vm62, %v57, %v61
    %v64 = vmul.f32 %v48, %v63
    %v65 = vmul.f32 %v50, %v63
    %v66 = vmul.f32 %v64, 32.0
    %v67 = vmul.f32 %v65, 32.0
    %v68 = vmul.f32 %v66, %v64
    %v69 = vmul.f32 %v67, %v65
    %v70 = vsub.f32 %v54, %v68
    %v71 = vsub.f32 %v56, %v69
    %v72 = vrcp.pop 31.0
    %v73 = vmul.f32 31.0, %v72
    %v74 = vsub.f32 1.0, %v73
    %v75 = vmul.f32 %v72, %v74
    %v76 = vadd.f32 %v72, %v75
    %vm77 = vweird.f32 %v72
    %v78 = vsel %vm77, %v72, %v76
    %v79 = vmul.f32 %v70, %v78
    %v80 = vmul.f32 %v71, %v78
    %v81 = vmax.f32 %v79, 0.0
    %v82 = vmax.f32 %v80, 0.0
    %v83 = vrsqrt.pop %v81
    %v84 = vmul.f32 %v83, %v81
    %v85 = vmul.f32 %v84, %v83
    %v86 = vmul.f32 0.5, %v85
    %v87 = vsub.f32 1.5, %v86
    %v88 = vmul.f32 %v83, %v87
    %v89 = vmul.f32 %v81, %v88
    %vm90 = vcmp.eq.f32.partialorder %v81, inf
    %v91 = vsel %vm90, %v81, %v89
    %vm92 = vcmp.eq.f32.partialorder %v81, 0.0
    %v93 = vand.u32 %v81, 2147483648
    %v94 = vsel %vm92, %v93, %v91
    %v95 = vrsqrt.pop %v82
    %v96 = vmul.f32 %v95, %v82
    %v97 = vmul.f32 %v96, %v95
    %v98 = vmul.f32 0.5, %v97
    %v99 = vsub.f32 1.5, %v98
    %v100 = vmul.f32 %v95, %v99
    %v101 = vmul.f32 %v82, %v100
    %vm102 = vcmp.eq.f32.partialorder %v82, inf
    %v103 = vsel %vm102, %v82, %v101
    %vm104 = vcmp.eq.f32.partialorder %v82, 0.0
    %v105 = vand.u32 %v82, 2147483648
    %v106 = vsel %vm104, %v105, %v103
    %v107 = vadd.f32 %v94, 1e-06
    %v108 = vadd.f32 %v106, 1e-06
    %v109 = vrcp.pop %v107
    %v110 = vrcp.pop %v108
    %v111 = vmul.f32 %v107, %v109
    %v112 = vmul.f32 %v108, %v110
    %v113 = vsub.f32 2.0, %v111
    %v114 = vsub.f32 2.0, %v112
    %v115 = vmul.f32 %v109, %v113
    %v116 = vmul.f32 %v110, %v114
    %v117 = vld [vmem:[#allocation5] sm:$0x1]
    %v118 = vld [vmem:[%s2] sm:$0x1]
    %v119 = vsub.f32 %v45, %v64
    %v120 = vsub.f32 %v46, %v65
    %v121 = vmul.f32 %v119, %v115
    %v122 = vmul.f32 %v120, %v116
    %v124 = vperm.slane %v117, 0
    %v126 = vmul.f32 %v124, %v121
    %v127 = vmul.f32 %v124, %v122
    %v129 = vperm.slane %v118, 0
    %v131 = vadd.f32 %v126, %v129
    %v132 = vadd.f32 %v127, %v129
    %133 = vst [vmem:[#allocation7] sm:$0xff] %v131
    %134 = vst [vmem:[#allocation7 + $0x8] sm:$0xff] %v132
    // Predicated region
    $region22: #{tpu_custom_call.1} parent=1 // pred_check
      _
    $region23: #{tpu_custom_call.1} parent=1 // pred_check_branch
      %136 = sbr.rel (0) target = $region25
    $region24: #{tpu_custom_call.1} parent=1 // pred_region
      %138 = vsyncadd [#allocation4], 0
      %s139 = sshll.u32 [#allocation7], 4
      %s140 = int_to_ptr.vmem [resolvable:$true] %s139
      %s141 = sshll.u32 %s3, 4
      %s142 = int_to_ptr.hbm [resolvable:$true] %s141
      %147 = dma.vmem_to_hbm [thread:$0]  %s140, 256, %s142, [#allocation4], 128, 128, 8
    $region25: #{tpu_custom_call.1} parent=1 // pred_fallthru
      _
    // Predicated region
    $region26: #{tpu_custom_call.1} parent=1 // pred_check
      _
    $region27: #{tpu_custom_call.1} parent=1 // pred_check_branch
      %149 = sbr.rel (0) target = $region29
    $region28: #{tpu_custom_call.1} parent=1 // pred_region
      %151 = dma.done [#allocation4], 256
    $region29: #{tpu_custom_call.1} parent=1 // pred_fallthru
      _
    %152 = vsyncpa [#allocation3], 1
    %153 = vsyncpa [#allocation6], 1
    %154 = vsyncpa [#allocation4], 1

</llo_original>
